<compile_context>
chip_gen: v6e
topology: v6e:2x2x1
jax: 0.10.0
libtpu: 0.0.40
codegen_flags: <defaults>
</compile_context>

<pallas_src>
import jax
import jax.numpy as jnp
from jax.experimental import pallas as pl
from jax.experimental.pallas import tpu as pltpu


def _implicit_mul_kernel(x_ref, s_ref, o_ref):
    # x_ref: (rows, L) activation tile; s_ref: (rows, 1) per-row scale
    # (the per-channel parameter replicated over batch). Broadcast multiply
    # over the lane axis — pure VPU filler on an HBM-bound pass.
    o_ref[...] = x_ref[...] * s_ref[...]


def implicit_m_forward(implicit_param: jax.Array) -> jax.Array:
    """ImplicitM.forward(): returns the parameter as-is.

    Identity path — no Pallas kernel. A (1, C, 1, 1) pass-through would be
    pure dispatch + grid-step + HBM round-trip overhead (see review)."""
    return implicit_param


def implicit_m_apply(x: jax.Array, implicit_param: jax.Array,
                     *, row_tile: int = 512) -> jax.Array:
    """Fused use-site: out[n, c, h, w] = x[n, c, h, w] * implicit[0, c, 0, 0]."""
    n, c, h, w = x.shape
    assert implicit_param.shape == (1, c, 1, 1), implicit_param.shape

    rows, lanes = n * c, h * w
    # Cast the parameter to the activation dtype ONCE (outside the kernel) and
    # replicate it per (batch, channel) row -> shape (rows, 1).
    scale = jnp.broadcast_to(
        implicit_param.reshape(1, c).astype(x.dtype), (n, c)
    ).reshape(rows, 1)
    x2d = x.reshape(rows, lanes)  # lane axis = H*W (lane-dense slab)

    small = (x2d.size * x2d.dtype.itemsize) <= (8 << 20)
    if small or rows % 8 != 0 or lanes % 128 != 0:
        # Whole-slab, no grid: avoids the 1-step-grid loop scaffolding and the
        # needless double-buffering machinery for tiny operands.
        # TODO(synk): large *unaligned* slabs fall into this branch too; pad
        # lanes up to a multiple of 128 if that regime ever matters.
        out2d = pl.pallas_call(
            _implicit_mul_kernel,
            out_shape=jax.ShapeDtypeStruct((rows, lanes), x.dtype),
            in_specs=[pl.BlockSpec(memory_space=pltpu.MemorySpace.VMEM),
                      pl.BlockSpec(memory_space=pltpu.MemorySpace.VMEM)],
            out_specs=pl.BlockSpec(memory_space=pltpu.MemorySpace.VMEM),
        )(x2d, scale)
    else:
        # Large activations: tile over rows only; the lane axis stays full so
        # stores are lane-dense / unmasked. Blocks are auto double-buffered.
        tr = min(row_tile, rows)
        out2d = pl.pallas_call(
            _implicit_mul_kernel,
            out_shape=jax.ShapeDtypeStruct((rows, lanes), x.dtype),
            grid=(pl.cdiv(rows, tr),),
            in_specs=[pl.BlockSpec((tr, lanes), lambda i: (i, 0)),
                      pl.BlockSpec((tr, 1), lambda i: (i, 0))],
            out_specs=pl.BlockSpec((tr, lanes), lambda i: (i, 0)),
            compiler_params=pltpu.CompilerParams(
                dimension_semantics=("parallel",)),
        )(x2d, scale)

    return out2d.reshape(n, c, h, w)


class ImplicitM:
    """Minimal JAX mirror of the PyTorch module (deterministic init)."""

    def __init__(self, channel: int, key: jax.Array):
        self.channel = channel
        # nn.init.normal_(mean=1.0, std=0.02)
        self.implicit = 1.0 + 0.02 * jax.random.normal(
            key, (1, channel, 1, 1), dtype=jnp.float32
        )

    def __call__(self) -> jax.Array:
        return implicit_m_forward(self.implicit)

    def apply(self, x: jax.Array) -> jax.Array:
        # The real (fused) use-site of ImplicitM: x * implicit.
        return implicit_m_apply(x, self.implicit)


if __name__ == "__main__":
    key = jax.random.PRNGKey(0)
    k_param, k_x = jax.random.split(key)

    channel = 4
    module = ImplicitM(channel, k_param)

    # forward(): returns the parameter (identity — no kernel, per review).
    p = jax.block_until_ready(module())
    assert p.shape == (1, channel, 1, 1), p.shape
    assert p.dtype == jnp.float32, p.dtype
    assert bool(jnp.all(p == module.implicit)), "forward() != implicit parameter"

    # Fused use-site Pallas kernel: x * implicit.
    x = jax.random.normal(k_x, (2, channel, 16, 16), dtype=jnp.float32)
    out = jax.block_until_ready(module.apply(x))

    ref = x * module.implicit
    assert out.shape == x.shape, out.shape
    assert bool(jnp.allclose(out, ref, rtol=1e-6, atol=1e-6)), "fused multiply mismatch"

    print("KERNEL_OK")
</pallas_src>

<mosaic_0001>
module attributes {stable_mosaic.version = 11 : i64} {
  func.func @_implicit_mul_kernel(%arg0: memref<8x256xf32, #tpu.memory_space<vmem>>, %arg1: memref<8x1xf32, #tpu.memory_space<vmem>>, %arg2: memref<8x256xf32, #tpu.memory_space<vmem>>) attributes {dimension_semantics = [], scalar_prefetch = 0 : i64, scratch_operands = 0 : i64, tpu.core_type = #tpu.core_type<tc>} {
    %c0 = arith.constant 0 : index
    %c0_0 = arith.constant 0 : index
    %0 = vector.load %arg0[%c0, %c0_0] : memref<8x256xf32, #tpu.memory_space<vmem>>, vector<8x256xf32>
    %c0_1 = arith.constant 0 : index
    %c0_2 = arith.constant 0 : index
    %1 = vector.load %arg1[%c0_1, %c0_2] : memref<8x1xf32, #tpu.memory_space<vmem>>, vector<8x1xf32>
    %2 = vector.broadcast %1 : vector<8x1xf32> to vector<8x256xf32>
    %3 = arith.mulf %0, %2 : vector<8x256xf32>
    %c0_3 = arith.constant 0 : index
    %c0_4 = arith.constant 0 : index
    %4 = vector.load %arg2[%c0_3, %c0_4] : memref<8x256xf32, #tpu.memory_space<vmem>>, vector<8x256xf32>
    tpu.vector_store %arg2[%c0_3, %c0_4], %3 {strides = array<i32>} : memref<8x256xf32, #tpu.memory_space<vmem>>, vector<8x256xf32>,
    return
  }
}

</mosaic_0001>

<llo_original>
// kernel: tpu_custom_call.1
$region0: #{tpu_custom_call.1}
  #allocation0 [shape = 'u32[]', space=smem, size = 0x4, offset = 0x4, fixed_abs, tag = 'smem constant byte address 0x4 - core index']
  #allocation1 [shape = 'u32[144,128]{1,0:T(1,128)}', space=vmem, size = 0x12000, scoped, tag = 'internal scratch']
  %s0 = inlined_call_operand.hbm [shape: f32[8,256], index: 0, kind: input, shape index: {}]
  %s1 = inlined_call_operand.vmem [shape: f32[8,1], index: 1, kind: input, shape index: {}]
  %s2 = inlined_call_operand.hbm [shape: f32[8,256], index: 2, kind: output, shape index: {}]
  %s3 = sld [smem:[#allocation0]]
  $region22: #{tpu_custom_call.1} parent=0
    _
  %s5 = ssub.s32 1, %s3
  %s6 = scalar_select 0, %s5, %s3
  $region1: #{tpu_custom_call.1} parent=0
    #allocation2 [shape = 'u8[8192]{0}', space=vmem, size = 0x2000, scoped, tag = 'input window, operand 0, single buffered']
    #allocation3 [shape = 's32[1]{0}', space=sflag, size = 0x4, scoped, tag = 'scoped memory for tpu_custom_call.1']
    #allocation4 [shape = 's32[1]{0}', space=sflag, size = 0x4, scoped, tag = 'scoped memory for tpu_custom_call.1']
    #allocation5 [shape = 'u8[8192]{0}', space=vmem, size = 0x2000, scoped, tag = 'output window, operand 0, single buffered']
    %7 = vsyncpa [#allocation3], 0
    %8 = vsyncpa [#allocation4], 0
    // Predicated region
    $region2: #{tpu_custom_call.1} parent=1 // pred_check
      _
    $region3: #{tpu_custom_call.1} parent=1 // pred_check_branch
      %10 = sbr.rel (0) target = $region5
    $region4: #{tpu_custom_call.1} parent=1 // pred_region
      %s12 = ssub.s32 256, 256
      %13 = vsyncadd [#allocation3], %s12
      %s15 = sshll.u32 [#allocation2], 4
      %s16 = int_to_ptr.vmem [resolvable:$true] %s15
      %18 = dma.hbm_to_vmem [thread:$0]  %s0, 256, %s16, [#allocation3]
    $region5: #{tpu_custom_call.1} parent=1 // pred_fallthru
      _
    // Predicated region
    $region6: #{tpu_custom_call.1} parent=1 // pred_check
      _
    $region7: #{tpu_custom_call.1} parent=1 // pred_check_branch
      %20 = sbr.rel (0) target = $region9
    $region8: #{tpu_custom_call.1} parent=1 // pred_region
      _
    $region9: #{tpu_custom_call.1} parent=1 // pred_fallthru
      _
    // Predicated region
    $region10: #{tpu_custom_call.1} parent=1 // pred_check
      _
    $region11: #{tpu_custom_call.1} parent=1 // pred_check_branch
      %22 = sbr.rel (0) target = $region13
    $region12: #{tpu_custom_call.1} parent=1 // pred_region
      %23 = dma.done [#allocation3], 256
    $region13: #{tpu_custom_call.1} parent=1 // pred_fallthru
      _
    %v24 = vld [vmem:[#allocation2] sm:$0xff]
    %v25 = vld [vmem:[#allocation2 + $0x8] sm:$0xff]
    %v26 = vld [vmem:[%s1] sm:$0xff]
    %28 = vset.pattern.permute.xlu0 0
    %29 = vperm.xlu0 %28, %v26
    %v30 = vpop.permute.xlu0 %29
    %v32 = vmul.f32 %v24, %v30
    %v33 = vmul.f32 %v25, %v30
    %34 = vst [vmem:[#allocation5] sm:$0xff] %v32
    %35 = vst [vmem:[#allocation5 + $0x8] sm:$0xff] %v33
    // Predicated region
    $region14: #{tpu_custom_call.1} parent=1 // pred_check
      _
    $region15: #{tpu_custom_call.1} parent=1 // pred_check_branch
      %37 = sbr.rel (0) target = $region17
    $region16: #{tpu_custom_call.1} parent=1 // pred_region
      %s39 = ssub.s32 256, 256
      %40 = vsyncadd [#allocation4], %s39
      %s42 = sshll.u32 [#allocation5], 4
      %s43 = int_to_ptr.vmem [resolvable:$true] %s42
      %45 = dma.vmem_to_hbm [thread:$0]  %s43, 256, %s2, [#allocation4]
    $region17: #{tpu_custom_call.1} parent=1 // pred_fallthru
      _
    // Predicated region
    $region18: #{tpu_custom_call.1} parent=1 // pred_check
      _
    $region19: #{tpu_custom_call.1} parent=1 // pred_check_branch
      %47 = sbr.rel (0) target = $region21
    $region20: #{tpu_custom_call.1} parent=1 // pred_region
      %48 = dma.done [#allocation4], 256
    $region21: #{tpu_custom_call.1} parent=1 // pred_fallthru
      _
    %49 = vsyncpa [#allocation3], 1
    %50 = vsyncpa [#allocation4], 1

</llo_original>
